<compile_context>
chip_gen: v6e
topology: v6e:2x2x1
jax: 0.10.0
libtpu: 0.0.40
codegen_flags: <defaults>
</compile_context>

<pallas_src>
import functools

import jax
import jax.numpy as jnp
from jax import lax
from jax.experimental import pallas as pl
from jax.experimental.pallas import tpu as pltpu


def _round_up(x, m):
    return (x + m - 1) // m * m


def _fused_proj_kernel(x_ref, wx_ref, b3d_ref, wp2_ref, bp_ref, o_ref, *, c3p):
    # x_ref:   [tm, Cf]        bf16 tokens of the backbone feature map
    # wx_ref:  [Cf, C3p + Ep]  bf16, fused weight  [ w3d_pad | wp1_pad ]
    # b3d_ref: [1,  C3p]       f32, cnn3d bias (zero padded)
    # wp2_ref: [C3p, Ep]       bf16, proj rows acting on cnn3d channels (zero-padded rows)
    # bp_ref:  [1,  Ep]        f32, proj bias (zero padded)
    # o_ref:   [tm, Ep]        f32
    x = x_ref[...]

    # One wide MXU matmul for the x operand:  z = [ x @ w3d | x @ wp1 ]
    z = jnp.dot(x, wx_ref[...], preferred_element_type=jnp.float32)

    # cnn3d stand-in (1x1 conv + relu) on the first C3p lanes (128-aligned slice).
    y = jnp.maximum(z[:, :c3p] + b3d_ref[...], 0.0)

    # proj(cat([x, y])) == x @ Wp1 + y @ Wp2 + bp ; x @ Wp1 is already in z[:, c3p:].
    out = (z[:, c3p:]
           + jnp.dot(y.astype(jnp.bfloat16), wp2_ref[...],
                     preferred_element_type=jnp.float32)
           + bp_ref[...])
    o_ref[...] = out.astype(o_ref.dtype)


def hybrid_embed_proj(x_tok, w3d, b3d, wp1, wp2, bp, *, tm=512):
    """x_tok: [N, Cf] -> [N, E] via the fused cnn3d + concat + proj kernel."""
    N, Cf = x_tok.shape
    C3 = w3d.shape[1]
    E = wp1.shape[1]

    # Lane-dense padding (multiples of 128) for the cnn3d channels and embed dim.
    # Zero-padded bias columns / zero-padded wp2 rows contribute exactly 0, so the
    # math is unchanged.
    C3p = _round_up(C3, 128)
    Ep = _round_up(E, 128)

    w3d_p = jnp.zeros((Cf, C3p), jnp.float32).at[:, :C3].set(w3d)
    b3d_p = jnp.zeros((1, C3p), jnp.float32).at[:, :C3].set(b3d.reshape(1, C3))
    wp1_p = jnp.zeros((Cf, Ep), jnp.float32).at[:, :E].set(wp1)
    wp2_p = jnp.zeros((C3p, Ep), jnp.float32).at[:C3, :E].set(wp2)
    bp_p = jnp.zeros((1, Ep), jnp.float32).at[:, :E].set(bp.reshape(1, E))

    # Fuse the two x-matmuls into one wide weight; bf16 operands, f32 accumulation.
    wx = jnp.concatenate([w3d_p, wp1_p], axis=1).astype(jnp.bfloat16)
    wp2_b = wp2_p.astype(jnp.bfloat16)

    # Token tile: as large as the (padded) token count allows, multiple of 128.
    tm = min(tm, _round_up(N, 128))
    N_pad = _round_up(N, tm)
    x_b = x_tok.astype(jnp.bfloat16)
    if N_pad != N:
        x_b = jnp.zeros((N_pad, Cf), jnp.bfloat16).at[:N].set(x_b)

    flops = 2 * N_pad * Cf * (C3p + Ep) + 2 * N_pad * C3p * Ep
    bytes_accessed = (N_pad * Cf * 2                 # bf16 tokens
                      + Cf * (C3p + Ep) * 2          # fused weight
                      + C3p * Ep * 2                 # wp2
                      + (C3p + Ep) * 4               # biases
                      + N_pad * Ep * 4)              # f32 output

    grid_spec = pltpu.PrefetchScalarGridSpec(
        num_scalar_prefetch=0,
        grid=(N_pad // tm,),
        in_specs=[
            pl.BlockSpec((tm, Cf), lambda i: (i, 0)),          # tokens (streamed)
            pl.BlockSpec((Cf, C3p + Ep), lambda i: (0, 0)),    # fused weight (resident)
            pl.BlockSpec((1, C3p), lambda i: (0, 0)),
            pl.BlockSpec((C3p, Ep), lambda i: (0, 0)),
            pl.BlockSpec((1, Ep), lambda i: (0, 0)),
        ],
        out_specs=pl.BlockSpec((tm, Ep), lambda i: (i, 0)),    # lane-dense (Ep % 128 == 0)
    )
    out = pl.pallas_call(
        functools.partial(_fused_proj_kernel, c3p=C3p),
        out_shape=jax.ShapeDtypeStruct((N_pad, Ep), jnp.float32),
        grid_spec=grid_spec,
        compiler_params=pltpu.CompilerParams(
            dimension_semantics=("parallel",),
            vmem_limit_bytes=48 * 1024 * 1024),
        cost_estimate=pl.CostEstimate(
            flops=flops, transcendentals=0, bytes_accessed=bytes_accessed),
    )(x_b, wx, b3d_p, wp2_b, bp_p)

    if N_pad != N or Ep != E:
        out = out[:N, :E]
    return out


def backbone_fwd_nhwc(x, w_bb, b_bb):
    """Synthetic backbone stand-in: 3x3 conv, stride 2, pad 1, relu.

    Input is NCHW (PyTorch layout); output is emitted directly in NHWC so the
    token view is a zero-cost reshape (no HBM transpose round-trip).
    """
    y = lax.conv_general_dilated(
        x, w_bb, window_strides=(2, 2), padding=((1, 1), (1, 1)),
        dimension_numbers=("NCHW", "OIHW", "NHWC"))
    return jnp.maximum(y + b_bb.reshape(1, 1, 1, -1), 0.0)


def hybrid_embed_forward(x, params, *, tm=512):
    """Full HybridEmbed forward. x: [B, in_chans, H, W] (NCHW, like PyTorch)."""
    feat = backbone_fwd_nhwc(x, params["w_bb"], params["b_bb"])     # [B, Gh, Gw, Cf]
    B, Gh, Gw, Cf = feat.shape
    x_tok = feat.reshape(B * Gh * Gw, Cf)                            # (b, h, w) row-major
    out = hybrid_embed_proj(
        x_tok, params["w3d"], params["b3d"],
        params["wp1"], params["wp2"], params["bp"], tm=tm)           # [N, E]
    E = out.shape[-1]
    return out.reshape(B, Gh * Gw, E)                                # [B, num_patches, E]


def make_params(key, in_chans, Cf, C3, E):
    ks = jax.random.split(key, 6)
    w_bb = jax.random.normal(ks[0], (Cf, in_chans, 3, 3), jnp.float32) * 0.1
    b_bb = jax.random.normal(ks[1], (Cf,), jnp.float32) * 0.1
    # cnn3d stand-in: Conv2d(Cf, C3, 1); torch weight [C3, Cf, 1, 1] -> [Cf, C3]
    w3d = jax.random.normal(ks[2], (Cf, C3), jnp.float32) * 0.1
    b3d = jax.random.normal(ks[3], (C3,), jnp.float32) * 0.1
    # proj: Conv2d(Cf + C3, E, 1); torch weight [E, Cf+C3, 1, 1] split by input channel
    wp = jax.random.normal(ks[4], (Cf + C3, E), jnp.float32) * 0.1
    wp1, wp2 = wp[:Cf], wp[Cf:]
    bp = jax.random.normal(ks[5], (E,), jnp.float32) * 0.1
    return dict(w_bb=w_bb, b_bb=b_bb, w3d=w3d, b3d=b3d, wp1=wp1, wp2=wp2, bp=bp)


def reference_forward(x, params):
    """Pure-JAX f32 reference of the exact PyTorch semantics (NCHW path)."""
    feat = lax.conv_general_dilated(
        x, params["w_bb"], window_strides=(2, 2), padding=((1, 1), (1, 1)),
        dimension_numbers=("NCHW", "OIHW", "NCHW"))
    feat = jnp.maximum(feat + params["b_bb"].reshape(1, -1, 1, 1), 0.0)
    B, Cf, Gh, Gw = feat.shape
    x_tok = jnp.transpose(feat, (0, 2, 3, 1)).reshape(B * Gh * Gw, Cf)
    y = jnp.maximum(x_tok @ params["w3d"] + params["b3d"][None, :], 0.0)
    comb = jnp.concatenate([x_tok, y], axis=-1)
    wp = jnp.concatenate([params["wp1"], params["wp2"]], axis=0)
    out = comb @ wp + params["bp"][None, :]
    return out.reshape(B, Gh * Gw, -1)


if __name__ == "__main__":
    # Small shapes: B=2, in_chans=4, img=16 -> stride-2 backbone -> 8x8 grid,
    # Cf=8 backbone channels, C3=8 cnn3d channels, embed_dim=128 (lane-dense),
    # patch_size=1.
    B, in_chans, H = 2, 4, 16
    Cf, C3, E = 8, 8, 128

    key = jax.random.PRNGKey(0)
    kx, kp = jax.random.split(key)
    x = jax.random.normal(kx, (B, in_chans, H, H), jnp.float32)
    params = make_params(kp, in_chans, Cf, C3, E)

    fwd = jax.jit(hybrid_embed_forward)
    out = jax.block_until_ready(fwd(x, params))

    ref = reference_forward(x, params)
    assert out.shape == (B, (H // 2) * (H // 2), E), out.shape
    # bf16 operands with f32 accumulation vs f32 reference -> relaxed tolerance.
    assert jnp.allclose(out, ref, atol=5e-2, rtol=5e-2), float(jnp.max(jnp.abs(out - ref)))

    print("KERNEL_OK")
</pallas_src>

<mosaic_0001>
module attributes {stable_mosaic.version = 11 : i64} {
  func.func @_fused_proj_kernel(%arg0: i32, %arg1: memref<128x8xbf16, #tpu.memory_space<vmem>>, %arg2: memref<8x256xbf16, #tpu.memory_space<vmem>>, %arg3: memref<1x128xf32, #tpu.memory_space<vmem>>, %arg4: memref<128x128xbf16, #tpu.memory_space<vmem>>, %arg5: memref<1x128xf32, #tpu.memory_space<vmem>>, %arg6: memref<128x128xf32, #tpu.memory_space<vmem>>) attributes {dimension_semantics = [#tpu.dimension_semantics<parallel>], iteration_bounds = array<i64: 1>, scalar_prefetch = 0 : i64, scratch_operands = 0 : i64, tpu.core_type = #tpu.core_type<tc>, window_params = [{transform_indices = @transform_0, window_bounds = array<i64: 128, 8>}, {pipeline_mode = #tpu.pipeline_mode<synchronous>, transform_indices = @transform_1, window_bounds = array<i64: 8, 256>}, {pipeline_mode = #tpu.pipeline_mode<synchronous>, transform_indices = @transform_2, window_bounds = array<i64: 1, 128>}, {pipeline_mode = #tpu.pipeline_mode<synchronous>, transform_indices = @transform_3, window_bounds = array<i64: 128, 128>}, {pipeline_mode = #tpu.pipeline_mode<synchronous>, transform_indices = @transform_4, window_bounds = array<i64: 1, 128>}, {transform_indices = @transform_5, window_bounds = array<i64: 128, 128>}]} {
    %c0 = arith.constant 0 : index
    %c0_0 = arith.constant 0 : index
    %0 = vector.load %arg1[%c0, %c0_0] : memref<128x8xbf16, #tpu.memory_space<vmem>>, vector<128x8xbf16>
    %c0_1 = arith.constant 0 : index
    %c0_2 = arith.constant 0 : index
    %1 = vector.load %arg2[%c0_1, %c0_2] : memref<8x256xbf16, #tpu.memory_space<vmem>>, vector<8x256xbf16>
    %cst = arith.constant dense<0.000000e+00> : vector<128x256xf32>
    %2 = tpu.matmul %0, %1, %cst {dimension_numbers = #tpu.dot_dimension_numbers<[1], [0], [0], [1], [0, 0, 1, 1], [], []>} : vector<128x8xbf16>, vector<8x256xbf16>, vector<128x256xf32> -> vector<128x256xf32>
    %3 = vector.extract_strided_slice %2 {offsets = [0, 0], sizes = [128, 128], strides = [1, 1]} : vector<128x256xf32> to vector<128x128xf32>
    %c0_3 = arith.constant 0 : index
    %c0_4 = arith.constant 0 : index
    %4 = vector.load %arg3[%c0_3, %c0_4] : memref<1x128xf32, #tpu.memory_space<vmem>>, vector<1x128xf32>
    %5 = vector.broadcast %4 : vector<1x128xf32> to vector<128x128xf32>
    %6 = arith.addf %3, %5 : vector<128x128xf32>
    %cst_5 = arith.constant 0.000000e+00 : f32
    %7 = vector.broadcast %cst_5 : f32 to vector<128x128xf32>
    %8 = arith.maximumf %6, %7 : vector<128x128xf32>
    %9 = vector.extract_strided_slice %2 {offsets = [0, 128], sizes = [128, 128], strides = [1, 1]} : vector<128x256xf32> to vector<128x128xf32>
    %10 = arith.truncf %8 : vector<128x128xf32> to vector<128x128xbf16>
    %c0_6 = arith.constant 0 : index
    %c0_7 = arith.constant 0 : index
    %11 = vector.load %arg4[%c0_6, %c0_7] : memref<128x128xbf16, #tpu.memory_space<vmem>>, vector<128x128xbf16>
    %cst_8 = arith.constant dense<0.000000e+00> : vector<128x128xf32>
    %12 = tpu.matmul %10, %11, %cst_8 {dimension_numbers = #tpu.dot_dimension_numbers<[1], [0], [0], [1], [0, 0, 1, 1], [], []>} : vector<128x128xbf16>, vector<128x128xbf16>, vector<128x128xf32> -> vector<128x128xf32>
    %13 = arith.addf %9, %12 : vector<128x128xf32>
    %c0_9 = arith.constant 0 : index
    %c0_10 = arith.constant 0 : index
    %14 = vector.load %arg5[%c0_9, %c0_10] : memref<1x128xf32, #tpu.memory_space<vmem>>, vector<1x128xf32>
    %15 = vector.broadcast %14 : vector<1x128xf32> to vector<128x128xf32>
    %16 = arith.addf %13, %15 : vector<128x128xf32>
    %c0_11 = arith.constant 0 : index
    %c0_12 = arith.constant 0 : index
    %17 = vector.load %arg6[%c0_11, %c0_12] : memref<128x128xf32, #tpu.memory_space<vmem>>, vector<128x128xf32>
    tpu.vector_store %arg6[%c0_11, %c0_12], %16 {strides = array<i32>} : memref<128x128xf32, #tpu.memory_space<vmem>>, vector<128x128xf32>,
    return
  }
  func.func @transform_0(%arg0: i32) -> (i32, i32) {
    %c0_i32 = arith.constant 0 : i32
    %c0_i32_0 = arith.constant 0 : i32
    return %arg0, %c0_i32 : i32, i32
  }
  func.func @transform_1(%arg0: i32) -> (i32, i32) {
    %c0_i32 = arith.constant 0 : i32
    %c0_i32_0 = arith.constant 0 : i32
    %c0_i32_1 = arith.constant 0 : i32
    return %c0_i32, %c0_i32_0 : i32, i32
  }
  func.func @transform_2(%arg0: i32) -> (i32, i32) {
    %c0_i32 = arith.constant 0 : i32
    %c0_i32_0 = arith.constant 0 : i32
    %c0_i32_1 = arith.constant 0 : i32
    return %c0_i32, %c0_i32_0 : i32, i32
  }
  func.func @transform_3(%arg0: i32) -> (i32, i32) {
    %c0_i32 = arith.constant 0 : i32
    %c0_i32_0 = arith.constant 0 : i32
    %c0_i32_1 = arith.constant 0 : i32
    return %c0_i32, %c0_i32_0 : i32, i32
  }
  func.func @transform_4(%arg0: i32) -> (i32, i32) {
    %c0_i32 = arith.constant 0 : i32
    %c0_i32_0 = arith.constant 0 : i32
    %c0_i32_1 = arith.constant 0 : i32
    return %c0_i32, %c0_i32_0 : i32, i32
  }
  func.func @transform_5(%arg0: i32) -> (i32, i32) {
    %c0_i32 = arith.constant 0 : i32
    %c0_i32_0 = arith.constant 0 : i32
    return %arg0, %c0_i32 : i32, i32
  }
}

</mosaic_0001>

<llo_original>
// kernel: hybrid_embed_forward.1
$region0: #{hybrid_embed_forward.1}
  #allocation0 [shape = 'u32[]', space=smem, size = 0x4, offset = 0x4, fixed_abs, tag = 'smem constant byte address 0x4 - core index']
  #allocation1 [shape = 'u32[144,128]{1,0:T(1,128)}', space=vmem, size = 0x12000, scoped, tag = 'internal scratch']
  %s0 = inlined_call_operand.vmem [shape: bf16[128,8], index: 0, kind: input, shape index: {}]
  %s1 = inlined_call_operand.vmem [shape: bf16[8,256], index: 1, kind: input, shape index: {}]
  %s2 = inlined_call_operand.vmem [shape: f32[1,128], index: 2, kind: input, shape index: {}]
  %s3 = inlined_call_operand.vmem [shape: bf16[128,128], index: 3, kind: input, shape index: {}]
  %s4 = inlined_call_operand.vmem [shape: f32[1,128], index: 4, kind: input, shape index: {}]
  %s5 = inlined_call_operand.hbm [shape: f32[128,128], index: 5, kind: output, shape index: {}]
  %s6 = sld [smem:[#allocation0]]
  $region30: #{hybrid_embed_forward.1} parent=0
    _
  %s8 = ssub.s32 1, %s6
  %s9 = scalar_select 0, %s8, %s6
  $region1: #{hybrid_embed_forward.1} parent=0
    #allocation2 [shape = 'u8[65536]{0}', space=vmem, size = 0x10000, scoped, tag = 'output window, operand 0, single buffered']
    #allocation3 [shape = 's32[1]{0}', space=sflag, size = 0x4, scoped, tag = 'scoped memory for hybrid_embed_forward.1']
    %10 = vsyncpa [#allocation3], 0
    // Predicated region
    $region2: #{hybrid_embed_forward.1} parent=1 // pred_check
      _
    $region3: #{hybrid_embed_forward.1} parent=1 // pred_check_branch
      %12 = sbr.rel (0) target = $region5
    $region4: #{hybrid_embed_forward.1} parent=1 // pred_region
      _
    $region5: #{hybrid_embed_forward.1} parent=1 // pred_fallthru
      _
    // Predicated region
    $region6: #{hybrid_embed_forward.1} parent=1 // pred_check
      _
    $region7: #{hybrid_embed_forward.1} parent=1 // pred_check_branch
      %14 = sbr.rel (0) target = $region9
    $region8: #{hybrid_embed_forward.1} parent=1 // pred_region
      _
    $region9: #{hybrid_embed_forward.1} parent=1 // pred_fallthru
      _
    // Predicated region
    $region10: #{hybrid_embed_forward.1} parent=1 // pred_check
      _
    $region11: #{hybrid_embed_forward.1} parent=1 // pred_check_branch
      %16 = sbr.rel (0) target = $region13
    $region12: #{hybrid_embed_forward.1} parent=1 // pred_region
      _
    $region13: #{hybrid_embed_forward.1} parent=1 // pred_fallthru
      _
    // Predicated region
    $region14: #{hybrid_embed_forward.1} parent=1 // pred_check
      _
    $region15: #{hybrid_embed_forward.1} parent=1 // pred_check_branch
      %18 = sbr.rel (0) target = $region17
    $region16: #{hybrid_embed_forward.1} parent=1 // pred_region
      _
    $region17: #{hybrid_embed_forward.1} parent=1 // pred_fallthru
      _
    // Predicated region
    $region18: #{hybrid_embed_forward.1} parent=1 // pred_check
      _
    $region19: #{hybrid_embed_forward.1} parent=1 // pred_check_branch
      %20 = sbr.rel (0) target = $region21
    $region20: #{hybrid_embed_forward.1} parent=1 // pred_region
      _
    $region21: #{hybrid_embed_forward.1} parent=1 // pred_fallthru
      _
    %v22 = vld [vmem:[%s0] sm:$0xf]
    %v23 = vld [vmem:[%s0 + $0x4] sm:$0xf]
    %v24 = vld [vmem:[%s0 + $0x8] sm:$0xf]
    %v25 = vld [vmem:[%s0 + $0xc] sm:$0xf]
    %v26 = vld [vmem:[%s0 + $0x10] sm:$0xf]
    %v27 = vld [vmem:[%s0 + $0x14] sm:$0xf]
    %v28 = vld [vmem:[%s0 + $0x18] sm:$0xf]
    %v29 = vld [vmem:[%s0 + $0x1c] sm:$0xf]
    %v30 = vld [vmem:[%s0 + $0x20] sm:$0xf]
    %v31 = vld [vmem:[%s0 + $0x24] sm:$0xf]
    %v32 = vld [vmem:[%s0 + $0x28] sm:$0xf]
    %v33 = vld [vmem:[%s0 + $0x2c] sm:$0xf]
    %v34 = vld [vmem:[%s0 + $0x30] sm:$0xf]
    %v35 = vld [vmem:[%s0 + $0x34] sm:$0xf]
    %v36 = vld [vmem:[%s0 + $0x38] sm:$0xf]
    %v37 = vld [vmem:[%s0 + $0x3c] sm:$0xf]
    %v38 = vld [vmem:[%s1] sm:$0xff]
    %v55 = vunpack.c.l.b16 %v22
    %v56 = vunpack.c.l.b16 %v23
    %v57 = vunpack.c.l.b16 %v24
    %v58 = vunpack.c.l.b16 %v25
    %v59 = vunpack.c.l.b16 %v26
    %v60 = vunpack.c.l.b16 %v27
    %v61 = vunpack.c.l.b16 %v28
    %v62 = vunpack.c.l.b16 %v29
    %v63 = vunpack.c.l.b16 %v30
    %v64 = vunpack.c.l.b16 %v31
    %v65 = vunpack.c.l.b16 %v32
    %v66 = vunpack.c.l.b16 %v33
    %v67 = vunpack.c.l.b16 %v34
    %v68 = vunpack.c.l.b16 %v35
    %v69 = vunpack.c.l.b16 %v36
    %v70 = vunpack.c.l.b16 %v37
    %v71 = vpack.c.b16 %v56, %v55
    %v72 = vpack.c.b16 %v58, %v57
    %v73 = vpack.c.b16 %v60, %v59
    %v74 = vpack.c.b16 %v62, %v61
    %v75 = vpack.c.b16 %v64, %v63
    %v76 = vpack.c.b16 %v66, %v65
    %v77 = vpack.c.b16 %v68, %v67
    %v78 = vpack.c.b16 %v70, %v69
    %v80 = vunpack.c.l.b16 %v38
    %v81 = vunpack.c.h.b16 %v38
    %v82 = vpack.c.b16 %v80, %v80
    %v83 = vpack.c.b16 %v81, %v81
    %vm84 = vcmask 64512
    %v86 = vsel %vm84, %v71, 0
    %v89 = vsel %vm84, %v72, 0
    %v92 = vsel %vm84, %v73, 0
    %v95 = vsel %vm84, %v74, 0
    %v98 = vsel %vm84, %v75, 0
    %v101 = vsel %vm84, %v76, 0
    %v104 = vsel %vm84, %v77, 0
    %v107 = vsel %vm84, %v78, 0
    %vm109 = vcmask 1043456
    %v111 = vsel %vm109, %v82, 0
    %v114 = vsel %vm109, %v83, 0
    %116 = vmatprep.subr.bf16.mxu0 0
    %117 = vmatpush1.bf16.msra.mxu0 0
    %118 = vmatprep.subr.bf16.mxu0 0
    %119 = vmatpush1.bf16.msra.mxu0 0
    %120 = vmatprep.subr.bf16.mxu0 0
    %121 = vmatpush1.bf16.msra.mxu0 0
    %122 = vmatprep.subr.bf16.mxu0 0
    %123 = vmatpush1.bf16.msra.mxu0 0
    %124 = vmatprep.subr.bf16.mxu0 0
    %125 = vmatpush1.bf16.msra.mxu0 0
    %126 = vmatprep.subr.bf16.mxu0 0
    %127 = vmatpush1.bf16.msra.mxu0 0
    %128 = vmatprep.subr.bf16.mxu0 0
    %129 = vmatpush1.bf16.msra.mxu0 0
    %130 = vmatprep.subr.bf16.mxu0 %v114
    %131 = vmatpush1.bf16.msra.mxu0 %v111
    %132 = vmatprep.subr.bf16.mxu0 0
    %133 = vmatpush2.bf16.msra.mxu0 0
    %134 = vmatprep.subr.bf16.mxu0 0
    %135 = vmatpush2.bf16.msra.mxu0 0
    %136 = vmatprep.subr.bf16.mxu0 0
    %137 = vmatpush2.bf16.msra.mxu0 0
    %138 = vmatprep.subr.bf16.mxu0 0
    %139 = vmatpush2.bf16.msra.mxu0 0
    %140 = vmatprep.subr.bf16.mxu0 0
    %141 = vmatpush2.bf16.msra.mxu0 0
    %142 = vmatprep.subr.bf16.mxu0 0
    %143 = vmatpush2.bf16.msra.mxu0 0
    %144 = vmatprep.subr.bf16.mxu0 0
    %145 = vmatpush2.bf16.msra.mxu0 0
    %146 = vmatprep.subr.bf16.mxu0 0
    %147 = vmatpush2.bf16.msra.mxu0 0
    %148 = vmatprep.mubr.bf16.mxu0 0
    %149 = vmatmul.mubr.bf16.gmra.mxu0 %v86
    %v150 = vpop.f32.mrf.mxu0
    %v151 = vadd.f32 0.0, %v150
    %v152 = vpop.f32.mrf.mxu0
    %v153 = vadd.f32 0.0, %v152
    %v154 = vpop.f32.mrf.mxu0
    %v155 = vadd.f32 0.0, %v154
    %v156 = vpop.f32.mrf.mxu0
    %v157 = vadd.f32 0.0, %v156
    %158 = vmatprep.mubr.bf16.mxu0 0
    %159 = vmatmul.mubr.bf16.gmra.mxu0 %v89
    %v160 = vpop.f32.mrf.mxu0
    %v161 = vadd.f32 0.0, %v160
    %v162 = vpop.f32.mrf.mxu0
    %v163 = vadd.f32 0.0, %v162
    %v164 = vpop.f32.mrf.mxu0
    %v165 = vadd.f32 0.0, %v164
    %v166 = vpop.f32.mrf.mxu0
    %v167 = vadd.f32 0.0, %v166
    %168 = vmatprep.mubr.bf16.mxu0 0
    %169 = vmatmul.mubr.bf16.gmra.mxu0 %v92
    %v170 = vpop.f32.mrf.mxu0
    %v171 = vadd.f32 0.0, %v170
    %v172 = vpop.f32.mrf.mxu0
    %v173 = vadd.f32 0.0, %v172
    %v174 = vpop.f32.mrf.mxu0
    %v175 = vadd.f32 0.0, %v174
    %v176 = vpop.f32.mrf.mxu0
    %v177 = vadd.f32 0.0, %v176
    %178 = vmatprep.mubr.bf16.mxu0 0
    %179 = vmatmul.mubr.bf16.gmra.mxu0 %v95
    %v180 = vpop.f32.mrf.mxu0
    %v181 = vadd.f32 0.0, %v180
    %v182 = vpop.f32.mrf.mxu0
    %v183 = vadd.f32 0.0, %v182
    %v184 = vpop.f32.mrf.mxu0
    %v185 = vadd.f32 0.0, %v184
    %v186 = vpop.f32.mrf.mxu0
    %v187 = vadd.f32 0.0, %v186
    %188 = vmatprep.mubr.bf16.mxu0 0
    %189 = vmatmul.mubr.bf16.gmra.mxu0 %v98
    %v190 = vpop.f32.mrf.mxu0
    %v191 = vadd.f32 0.0, %v190
    %v192 = vpop.f32.mrf.mxu0
    %v193 = vadd.f32 0.0, %v192
    %v194 = vpop.f32.mrf.mxu0
    %v195 = vadd.f32 0.0, %v194
    %v196 = vpop.f32.mrf.mxu0
    %v197 = vadd.f32 0.0, %v196
    %198 = vmatprep.mubr.bf16.mxu0 0
    %199 = vmatmul.mubr.bf16.gmra.mxu0 %v101
    %v200 = vpop.f32.mrf.mxu0
    %v201 = vadd.f32 0.0, %v200
    %v202 = vpop.f32.mrf.mxu0
    %v203 = vadd.f32 0.0, %v202
    %v204 = vpop.f32.mrf.mxu0
    %v205 = vadd.f32 0.0, %v204
    %v206 = vpop.f32.mrf.mxu0
    %v207 = vadd.f32 0.0, %v206
    %208 = vmatprep.mubr.bf16.mxu0 0
    %209 = vmatmul.mubr.bf16.gmra.mxu0 %v104
    %v210 = vpop.f32.mrf.mxu0
    %v211 = vadd.f32 0.0, %v210
    %v212 = vpop.f32.mrf.mxu0
    %v213 = vadd.f32 0.0, %v212
    %v214 = vpop.f32.mrf.mxu0
    %v215 = vadd.f32 0.0, %v214
    %v216 = vpop.f32.mrf.mxu0
    %v217 = vadd.f32 0.0, %v216
    %218 = vmatprep.mubr.bf16.mxu0 0
    %219 = vmatmul.mubr.bf16.gmra.mxu0 %v107
    %v220 = vpop.f32.mrf.mxu0
    %v221 = vadd.f32 0.0, %v220
    %v222 = vpop.f32.mrf.mxu0
    %v223 = vadd.f32 0.0, %v222
    %v224 = vpop.f32.mrf.mxu0
    %v225 = vadd.f32 0.0, %v224
    %v226 = vpop.f32.mrf.mxu0
    %v227 = vadd.f32 0.0, %v226
    %228 = vdwg.mxu0
    %v229 = vld [vmem:[%s2] sm:$0x1]
    %v231 = vlaneseq
    %v232 = vshrl.u32 %v231, 7
    %v233 = vsub.s32 0, %v232
    %v234 = vrot.slane %v229, %v233
    %v236 = vadd.f32 %v151, %v234
    %v237 = vadd.f32 %v155, %v234
    %v238 = vadd.f32 %v161, %v234
    %v239 = vadd.f32 %v165, %v234
    %v240 = vadd.f32 %v171, %v234
    %v241 = vadd.f32 %v175, %v234
    %v242 = vadd.f32 %v181, %v234
    %v243 = vadd.f32 %v185, %v234
    %v244 = vadd.f32 %v191, %v234
    %v245 = vadd.f32 %v195, %v234
    %v246 = vadd.f32 %v201, %v234
    %v247 = vadd.f32 %v205, %v234
    %v248 = vadd.f32 %v211, %v234
    %v249 = vadd.f32 %v215, %v234
    %v250 = vadd.f32 %v221, %v234
    %v251 = vadd.f32 %v225, %v234
    %v252 = vmax.f32 %v236, 0.0
    %v253 = vmax.f32 %v237, 0.0
    %v254 = vmax.f32 %v238, 0.0
    %v255 = vmax.f32 %v239, 0.0
    %v256 = vmax.f32 %v240, 0.0
    %v257 = vmax.f32 %v241, 0.0
    %v258 = vmax.f32 %v242, 0.0
    %v259 = vmax.f32 %v243, 0.0
    %v260 = vmax.f32 %v244, 0.0
    %v261 = vmax.f32 %v245, 0.0
    %v262 = vmax.f32 %v246, 0.0
    %v263 = vmax.f32 %v247, 0.0
    %v264 = vmax.f32 %v248, 0.0
    %v265 = vmax.f32 %v249, 0.0
    %v266 = vmax.f32 %v250, 0.0
    %v267 = vmax.f32 %v251, 0.0
    %v268 = vpack.c.bf16 %v253, %v252
    %v269 = vpack.c.bf16 %v255, %v254
    %v270 = vpack.c.bf16 %v257, %v256
    %v271 = vpack.c.bf16 %v259, %v258
    %v272 = vpack.c.bf16 %v261, %v260
    %v273 = vpack.c.bf16 %v263, %v262
    %v274 = vpack.c.bf16 %v265, %v264
    %v275 = vpack.c.bf16 %v267, %v266
    %v276 = vld [vmem:[%s3] sm:$0xf]
    %v277 = vld [vmem:[%s3 + $0x4] sm:$0xf]
    %v278 = vld [vmem:[%s3 + $0x8] sm:$0xf]
    %v279 = vld [vmem:[%s3 + $0xc] sm:$0xf]
    %v280 = vld [vmem:[%s3 + $0x10] sm:$0xf]
    %v281 = vld [vmem:[%s3 + $0x14] sm:$0xf]
    %v282 = vld [vmem:[%s3 + $0x18] sm:$0xf]
    %v283 = vld [vmem:[%s3 + $0x1c] sm:$0xf]
    %v284 = vld [vmem:[%s3 + $0x20] sm:$0xf]
    %v285 = vld [vmem:[%s3 + $0x24] sm:$0xf]
    %v286 = vld [vmem:[%s3 + $0x28] sm:$0xf]
    %v287 = vld [vmem:[%s3 + $0x2c] sm:$0xf]
    %v288 = vld [vmem:[%s3 + $0x30] sm:$0xf]
    %v289 = vld [vmem:[%s3 + $0x34] sm:$0xf]
    %v290 = vld [vmem:[%s3 + $0x38] sm:$0xf]
    %v291 = vld [vmem:[%s3 + $0x3c] sm:$0xf]
    %v308 = vunpack.c.l.b16 %v276
    %v309 = vunpack.c.l.b16 %v277
    %v310 = vunpack.c.l.b16 %v278
    %v311 = vunpack.c.l.b16 %v279
    %v312 = vunpack.c.l.b16 %v280
    %v313 = vunpack.c.l.b16 %v281
    %v314 = vunpack.c.l.b16 %v282
    %v315 = vunpack.c.l.b16 %v283
    %v316 = vunpack.c.l.b16 %v284
    %v317 = vunpack.c.l.b16 %v285
    %v318 = vunpack.c.l.b16 %v286
    %v319 = vunpack.c.l.b16 %v287
    %v320 = vunpack.c.l.b16 %v288
    %v321 = vunpack.c.l.b16 %v289
    %v322 = vunpack.c.l.b16 %v290
    %v323 = vunpack.c.l.b16 %v291
    %v324 = vpack.c.b16 %v309, %v308
    %v325 = vpack.c.b16 %v311, %v310
    %v326 = vpack.c.b16 %v313, %v312
    %v327 = vpack.c.b16 %v315, %v314
    %v328 = vpack.c.b16 %v317, %v316
    %v329 = vpack.c.b16 %v319, %v318
    %v330 = vpack.c.b16 %v321, %v320
    %v331 = vpack.c.b16 %v323, %v322
    %340 = vmatprep.subr.bf16.mxu0 0
    %341 = vmatpush1.bf16.msra.mxu0 %v331
    %342 = vmatprep.subr.bf16.mxu0 0
    %343 = vmatpush1.bf16.msra.mxu0 %v330
    %344 = vmatprep.subr.bf16.mxu0 0
    %345 = vmatpush1.bf16.msra.mxu0 %v329
    %346 = vmatprep.subr.bf16.mxu0 0
    %347 = vmatpush1.bf16.msra.mxu0 %v328
    %348 = vmatprep.subr.bf16.mxu0 0
    %349 = vmatpush1.bf16.msra.mxu0 %v327
    %350 = vmatprep.subr.bf16.mxu0 0
    %351 = vmatpush1.bf16.msra.mxu0 %v326
    %352 = vmatprep.subr.bf16.mxu0 0
    %353 = vmatpush1.bf16.msra.mxu0 %v325
    %354 = vmatprep.subr.bf16.mxu0 0
    %355 = vmatpush1.bf16.msra.mxu0 %v324
    %356 = vmatprep.subr.bf16.mxu0 0
    %357 = vmatpush2.bf16.msra.mxu0 0
    %358 = vmatprep.subr.bf16.mxu0 0
    %359 = vmatpush2.bf16.msra.mxu0 0
    %360 = vmatprep.subr.bf16.mxu0 0
    %361 = vmatpush2.bf16.msra.mxu0 0
    %362 = vmatprep.subr.bf16.mxu0 0
    %363 = vmatpush2.bf16.msra.mxu0 0
    %364 = vmatprep.subr.bf16.mxu0 0
    %365 = vmatpush2.bf16.msra.mxu0 0
    %366 = vmatprep.subr.bf16.mxu0 0
    %367 = vmatpush2.bf16.msra.mxu0 0
    %368 = vmatprep.subr.bf16.mxu0 0
    %369 = vmatpush2.bf16.msra.mxu0 0
    %370 = vmatprep.subr.bf16.mxu0 0
    %371 = vmatpush2.bf16.msra.mxu0 0
    %372 = vmatprep.mubr.bf16.mxu0 0
    %373 = vmatmul.mubr.bf16.gmra.mxu0 %v268
    %v374 = vpop.f32.mrf.mxu0
    %v375 = vadd.f32 0.0, %v374
    %v376 = vpop.f32.mrf.mxu0
    %v377 = vpop.f32.mrf.mxu0
    %v378 = vadd.f32 0.0, %v377
    %v379 = vpop.f32.mrf.mxu0
    %380 = vmatprep.mubr.bf16.mxu0 0
    %381 = vmatmul.mubr.bf16.gmra.mxu0 %v269
    %v382 = vpop.f32.mrf.mxu0
    %v383 = vadd.f32 0.0, %v382
    %v384 = vpop.f32.mrf.mxu0
    %v385 = vpop.f32.mrf.mxu0
    %v386 = vadd.f32 0.0, %v385
    %v387 = vpop.f32.mrf.mxu0
    %388 = vmatprep.mubr.bf16.mxu0 0
    %389 = vmatmul.mubr.bf16.gmra.mxu0 %v270
    %v390 = vpop.f32.mrf.mxu0
    %v391 = vadd.f32 0.0, %v390
    %v392 = vpop.f32.mrf.mxu0
    %v393 = vpop.f32.mrf.mxu0
    %v394 = vadd.f32 0.0, %v393
    %v395 = vpop.f32.mrf.mxu0
    %396 = vmatprep.mubr.bf16.mxu0 0
    %397 = vmatmul.mubr.bf16.gmra.mxu0 %v271
    %v398 = vpop.f32.mrf.mxu0
    %v399 = vadd.f32 0.0, %v398
    %v400 = vpop.f32.mrf.mxu0
    %v401 = vpop.f32.mrf.mxu0
    %v402 = vadd.f32 0.0, %v401
    %v403 = vpop.f32.mrf.mxu0
    %404 = vmatprep.mubr.bf16.mxu0 0
    %405 = vmatmul.mubr.bf16.gmra.mxu0 %v272
    %v406 = vpop.f32.mrf.mxu0
    %v407 = vadd.f32 0.0, %v406
    %v408 = vpop.f32.mrf.mxu0
    %v409 = vpop.f32.mrf.mxu0
    %v410 = vadd.f32 0.0, %v409
    %v411 = vpop.f32.mrf.mxu0
    %412 = vmatprep.mubr.bf16.mxu0 0
    %413 = vmatmul.mubr.bf16.gmra.mxu0 %v273
    %v414 = vpop.f32.mrf.mxu0
    %v415 = vadd.f32 0.0, %v414
    %v416 = vpop.f32.mrf.mxu0
    %v417 = vpop.f32.mrf.mxu0
    %v418 = vadd.f32 0.0, %v417
    %v419 = vpop.f32.mrf.mxu0
    %420 = vmatprep.mubr.bf16.mxu0 0
    %421 = vmatmul.mubr.bf16.gmra.mxu0 %v274
    %v422 = vpop.f32.mrf.mxu0
    %v423 = vadd.f32 0.0, %v422
    %v424 = vpop.f32.mrf.mxu0
    %v425 = vpop.f32.mrf.mxu0
    %v426 = vadd.f32 0.0, %v425
    %v427 = vpop.f32.mrf.mxu0
    %428 = vmatprep.mubr.bf16.mxu0 0
    %429 = vmatmul.mubr.bf16.gmra.mxu0 %v275
    %v430 = vpop.f32.mrf.mxu0
    %v431 = vadd.f32 0.0, %v430
    %v432 = vpop.f32.mrf.mxu0
    %v433 = vpop.f32.mrf.mxu0
    %v434 = vadd.f32 0.0, %v433
    %v435 = vpop.f32.mrf.mxu0
    %436 = vdwg.mxu0
    %v437 = vadd.f32 %v153, %v375
    %v438 = vadd.f32 %v157, %v378
    %v439 = vadd.f32 %v163, %v383
    %v440 = vadd.f32 %v167, %v386
    %v441 = vadd.f32 %v173, %v391
    %v442 = vadd.f32 %v177, %v394
    %v443 = vadd.f32 %v183, %v399
    %v444 = vadd.f32 %v187, %v402
    %v445 = vadd.f32 %v193, %v407
    %v446 = vadd.f32 %v197, %v410
    %v447 = vadd.f32 %v203, %v415
    %v448 = vadd.f32 %v207, %v418
    %v449 = vadd.f32 %v213, %v423
    %v450 = vadd.f32 %v217, %v426
    %v451 = vadd.f32 %v223, %v431
    %v452 = vadd.f32 %v227, %v434
    %v453 = vld [vmem:[%s4] sm:$0x1]
    %v455 = vlaneseq
    %v456 = vshrl.u32 %v455, 7
    %v457 = vsub.s32 0, %v456
    %v458 = vrot.slane %v453, %v457
    %v460 = vadd.f32 %v437, %v458
    %v461 = vadd.f32 %v438, %v458
    %v462 = vadd.f32 %v439, %v458
    %v463 = vadd.f32 %v440, %v458
    %v464 = vadd.f32 %v441, %v458
    %v465 = vadd.f32 %v442, %v458
    %v466 = vadd.f32 %v443, %v458
    %v467 = vadd.f32 %v444, %v458
    %v468 = vadd.f32 %v445, %v458
    %v469 = vadd.f32 %v446, %v458
    %v470 = vadd.f32 %v447, %v458
    %v471 = vadd.f32 %v448, %v458
    %v472 = vadd.f32 %v449, %v458
    %v473 = vadd.f32 %v450, %v458
    %v474 = vadd.f32 %v451, %v458
    %v475 = vadd.f32 %v452, %v458
    %476 = vst [vmem:[#allocation2] sm:$0xff] %v460
    %477 = vst [vmem:[#allocation2 + $0x8] sm:$0xff] %v461
    %478 = vst [vmem:[#allocation2 + $0x10] sm:$0xff] %v462
    %479 = vst [vmem:[#allocation2 + $0x18] sm:$0xff] %v463
    %480 = vst [vmem:[#allocation2 + $0x20] sm:$0xff] %v464
    %481 = vst [vmem:[#allocation2 + $0x28] sm:$0xff] %v465
    %482 = vst [vmem:[#allocation2 + $0x30] sm:$0xff] %v466
    %483 = vst [vmem:[#allocation2 + $0x38] sm:$0xff] %v467
    %484 = vst [vmem:[#allocation2 + $0x40] sm:$0xff] %v468
    %485 = vst [vmem:[#allocation2 + $0x48] sm:$0xff] %v469
    %486 = vst [vmem:[#allocation2 + $0x50] sm:$0xff] %v470
    %487 = vst [vmem:[#allocation2 + $0x58] sm:$0xff] %v471
    %488 = vst [vmem:[#allocation2 + $0x60] sm:$0xff] %v472
    %489 = vst [vmem:[#allocation2 + $0x68] sm:$0xff] %v473
    %490 = vst [vmem:[#allocation2 + $0x70] sm:$0xff] %v474
    %491 = vst [vmem:[#allocation2 + $0x78] sm:$0xff] %v475
    // Predicated region
    $region22: #{hybrid_embed_forward.1} parent=1 // pred_check
      _
    $region23: #{hybrid_embed_forward.1} parent=1 // pred_check_branch
      %493 = sbr.rel (0) target = $region25
    $region24: #{hybrid_embed_forward.1} parent=1 // pred_region
      %s495 = ssub.s32 2048, 2048
      %496 = vsyncadd [#allocation3], %s495
      %s497 = sshll.u32 [#allocation2], 4
      %s498 = int_to_ptr.vmem [resolvable:$true] %s497
      %503 = dma.vmem_to_hbm [thread:$0]  %s498, 2048, %s5, [#allocation3], 128, 128, 8
    $region25: #{hybrid_embed_forward.1} parent=1 // pred_fallthru
      _
    // Predicated region
    $region26: #{hybrid_embed_forward.1} parent=1 // pred_check
      _
    $region27: #{hybrid_embed_forward.1} parent=1 // pred_check_branch
      %505 = sbr.rel (0) target = $region29
    $region28: #{hybrid_embed_forward.1} parent=1 // pred_region
      %506 = dma.done [#allocation3], 2048
    $region29: #{hybrid_embed_forward.1} parent=1 // pred_fallthru
      _
    %507 = vsyncpa [#allocation3], 1

</llo_original>
